<compile_context>
chip_gen: v6e
topology: v6e:2x2x1
jax: 0.10.0
libtpu: 0.0.40
codegen_flags: <defaults>
</compile_context>

<pallas_src>
import functools
import math

import jax
import jax.numpy as jnp
from jax.experimental import pallas as pl
from jax.experimental.pallas import tpu as pltpu


_LN10 = math.log(10.0)
_PEAK_TERM = 20.0 * math.log10(255.0)  # == 10*log10(255^2)


def _psnr_kernel(t_ref, f_ref, out_ref, acc_ref, *, inv_n, rows_valid,
                 rows_chunk, mask_rows):
    """grid = (B, n_chunks): batch parallel, chunks serial (per-image SSE)."""
    c = pl.program_id(1)

    @pl.when(c == 0)
    def _init():
        acc_ref[...] = jnp.zeros_like(acc_ref)

    # Hot path: in-kernel uint8 quantization (floor == uint8 cast for data in
    # [0, 255]), difference, square.  ~5 VPU ops/elem-pair at 8 B/pair from HBM
    # -> memory-bound on v5e/v6e/v7x, so the compute hides under the DMA.
    t = jnp.floor(t_ref[...])
    f = jnp.floor(f_ref[...])
    d = t - f
    if mask_rows:
        # Last chunk of the grid may overhang the image rows; zero those rows.
        row = jax.lax.broadcasted_iota(jnp.int32, d.shape, 0) + c * rows_chunk
        d = jnp.where(row < rows_valid, d, 0.0)

    # Keep the lane axis: only a sublane reduce per chunk; the cross-lane
    # reduce happens once per image in the finalize branch below.
    acc_ref[...] = acc_ref[...] + jnp.sum(d * d, axis=0, keepdims=True)

    # Finalize this image: psnr = 20*log10(255) - 10*log10(mse)
    @pl.when(c == pl.num_programs(1) - 1)
    def _fin():
        sse = jnp.sum(acc_ref[...], keepdims=True)             # (1, 1)
        mse = sse * inv_n                                      # (1, 1)
        # TODO(synk): mse == 0 (identical quantized images) gives +inf PSNR,
        # matching the PyTorch reference; add an epsilon if finite output is needed.
        psnr = _PEAK_TERM - (10.0 / _LN10) * jnp.log(mse)      # (1, 1)
        out_ref[...] = jnp.reshape(psnr, (1, 1, 1))


def _largest_lane_divisor(n, max_lane):
    """Largest multiple of 128 that divides n and is <= max_lane (0 if none)."""
    for m in range(min(max_lane, n) // 128, 0, -1):
        if n % (m * 128) == 0:
            return m * 128
    return 0


def t_loss_psnr(im_true, im_fake, *, max_lane=2048,
                block_budget_bytes=4 * 1024 * 1024):
    """Mean PSNR over the batch. Inputs: NCHW float arrays with values in [0, 255]."""
    assert im_true.shape == im_fake.shape
    B, C, H, W = im_true.shape
    N = C * H * W

    # Stream f32 straight into the kernel (quantization happens in-kernel).
    # TODO(synk): numpy's .astype(np.uint8) wraps mod 256 for out-of-range/NaN
    # values while the in-kernel floor does not; identical for inputs in [0, 255].
    t = im_true.reshape(B, N).astype(jnp.float32)
    f = im_fake.reshape(B, N).astype(jnp.float32)

    # Lane-dense per-image layout (B, R, L); prefer an exact 128-multiple
    # divisor of N so the reshape is free and no padding pass is needed.
    L = _largest_lane_divisor(N, max_lane)
    if L:
        R = N // L
    else:
        # Rare fallback (no 128-multiple divides N): zero-pad both inputs
        # identically so padded pixels contribute 0 to the SSE.
        L = 128
        R = -(-N // L)
        pad = R * L - N
        t = jnp.pad(t, ((0, 0), (0, pad)))
        f = jnp.pad(f, ((0, 0), (0, pad)))
    t = t.reshape(B, R, L)
    f = f.reshape(B, R, L)

    # Rows per grid step: whole image if it fits the byte budget, otherwise a
    # budget-sized multiple-of-8 tile (2 inputs x 2 buffers x ~4 MiB = ~16 MiB).
    rows_budget = max(8, (block_budget_bytes // (L * 4)) // 8 * 8)
    if R <= rows_budget:
        rows_chunk, n_chunks = R, 1
    else:
        rows_chunk = rows_budget
        n_chunks = -(-R // rows_chunk)
    mask_rows = (rows_chunk * n_chunks) != R

    kernel = functools.partial(
        _psnr_kernel,
        inv_n=1.0 / float(N),
        rows_valid=R,
        rows_chunk=rows_chunk,
        mask_rows=mask_rows,
    )

    # TODO(synk): on v7x with B == 1 the second TensorCore idles; a chunk-parallel
    # variant emitting per-chunk partial SSEs would recover it for tiny batches.
    per_image_psnr = pl.pallas_call(
        kernel,
        out_shape=jax.ShapeDtypeStruct((B, 1, 1), jnp.float32),
        grid_spec=pltpu.PrefetchScalarGridSpec(
            num_scalar_prefetch=0,
            grid=(B, n_chunks),
            in_specs=[
                pl.BlockSpec((pl.Squeezed(), rows_chunk, L), lambda b, c: (b, c, 0)),
                pl.BlockSpec((pl.Squeezed(), rows_chunk, L), lambda b, c: (b, c, 0)),
            ],
            out_specs=pl.BlockSpec((1, 1, 1), lambda b, c: (b, 0, 0)),
            scratch_shapes=[pltpu.VMEM((1, L), jnp.float32)],
        ),
        compiler_params=pltpu.CompilerParams(
            # Batch axis shards across TensorCores; chunk axis carries the
            # per-image SSE accumulator.
            dimension_semantics=("parallel", "arbitrary"),
            vmem_limit_bytes=32 * 1024 * 1024,
        ),
    )(t, f)

    # Tiny epilogue on B scalars.
    return jnp.mean(jnp.reshape(per_image_psnr, (B,)))


def _reference_psnr(im_true, im_fake):
    t = im_true.astype(jnp.uint8).astype(jnp.float32)
    f = im_fake.astype(jnp.uint8).astype(jnp.float32)
    mse = jnp.mean((t - f) ** 2, axis=(1, 2, 3))
    return jnp.mean(10.0 * jnp.log10(255.0 ** 2 / mse))


if __name__ == "__main__":
    key = jax.random.PRNGKey(0)
    k1, k2 = jax.random.split(key)
    # Small NCHW inputs, values in [0, 255] like 8-bit images.
    im_true = jax.random.uniform(k1, (2, 4, 16, 16), minval=0.0, maxval=255.0)
    im_fake = jax.random.uniform(k2, (2, 4, 16, 16), minval=0.0, maxval=255.0)

    m_psnr = jax.jit(t_loss_psnr)(im_true, im_fake)
    jax.block_until_ready(m_psnr)

    ref = _reference_psnr(im_true, im_fake)
    assert abs(float(m_psnr) - float(ref)) < 1e-3, (float(m_psnr), float(ref))
    print("KERNEL_OK")
</pallas_src>

<mosaic_0001>
module attributes {stable_mosaic.version = 11 : i64} {
  func.func @_psnr_kernel(%arg0: i32, %arg1: i32, %arg2: memref<1x1x1024xf32, #tpu.memory_space<vmem>>, %arg3: memref<1x1x1024xf32, #tpu.memory_space<vmem>>, %arg4: memref<1x1x1xf32, #tpu.memory_space<vmem>>, %arg5: memref<1x1024xf32, #tpu.memory_space<vmem>>) attributes {dimension_semantics = [#tpu.dimension_semantics<parallel>, #tpu.dimension_semantics<arbitrary>], iteration_bounds = array<i64: 2, 1>, scalar_prefetch = 0 : i64, scratch_operands = 1 : i64, tpu.core_type = #tpu.core_type<tc>, window_params = [{transform_indices = @transform_0, window_bounds = array<i64: 1, 1, 1024>}, {transform_indices = @transform_1, window_bounds = array<i64: 1, 1, 1024>}, {transform_indices = @transform_2, window_bounds = array<i64: 1, 1, 1>}]} {
    %c0_i32 = arith.constant 0 : i32
    %0 = arith.cmpi eq, %arg1, %c0_i32 : i32
    %1 = arith.extui %0 : i1 to i32
    %c0_i32_0 = arith.constant 0 : i32
    %2 = arith.cmpi ne, %1, %c0_i32_0 : i32
    scf.if %2 {
      %cst_12 = arith.constant 0.000000e+00 : f32
      %19 = vector.broadcast %cst_12 : f32 to vector<1x1024xf32>
      %c0_13 = arith.constant 0 : index
      %c0_14 = arith.constant 0 : index
      %20 = vector.load %arg5[%c0_13, %c0_14] : memref<1x1024xf32, #tpu.memory_space<vmem>>, vector<1x1024xf32>
      tpu.vector_store %arg5[%c0_13, %c0_14], %19 {strides = array<i32>} : memref<1x1024xf32, #tpu.memory_space<vmem>>, vector<1x1024xf32>,
    } else {
    }
    %c0 = arith.constant 0 : index
    %c0_1 = arith.constant 0 : index
    %c0_2 = arith.constant 0 : index
    %3 = vector.load %arg2[%c0, %c0_1, %c0_2] : memref<1x1x1024xf32, #tpu.memory_space<vmem>>, vector<1x1x1024xf32>
    %4 = vector.shape_cast %3 : vector<1x1x1024xf32> to vector<1x1024xf32>
    %5 = math.floor %4 : vector<1x1024xf32>
    %c0_3 = arith.constant 0 : index
    %c0_4 = arith.constant 0 : index
    %c0_5 = arith.constant 0 : index
    %6 = vector.load %arg3[%c0_3, %c0_4, %c0_5] : memref<1x1x1024xf32, #tpu.memory_space<vmem>>, vector<1x1x1024xf32>
    %7 = vector.shape_cast %6 : vector<1x1x1024xf32> to vector<1x1024xf32>
    %8 = math.floor %7 : vector<1x1024xf32>
    %9 = arith.subf %5, %8 : vector<1x1024xf32>
    %c0_6 = arith.constant 0 : index
    %c0_7 = arith.constant 0 : index
    %10 = vector.load %arg5[%c0_6, %c0_7] : memref<1x1024xf32, #tpu.memory_space<vmem>>, vector<1x1024xf32>
    %11 = arith.mulf %9, %9 : vector<1x1024xf32>
    %cst = arith.constant dense<0.000000e+00> : vector<1024xf32>
    %12 = vector.multi_reduction <add>, %11, %cst [0] : vector<1x1024xf32> to vector<1024xf32>
    %13 = vector.shape_cast %12 : vector<1024xf32> to vector<1x1024xf32>
    %14 = arith.addf %10, %13 : vector<1x1024xf32>
    %c0_8 = arith.constant 0 : index
    %c0_9 = arith.constant 0 : index
    %15 = vector.load %arg5[%c0_8, %c0_9] : memref<1x1024xf32, #tpu.memory_space<vmem>>, vector<1x1024xf32>
    tpu.vector_store %arg5[%c0_8, %c0_9], %14 {strides = array<i32>} : memref<1x1024xf32, #tpu.memory_space<vmem>>, vector<1x1024xf32>,
    %c0_i32_10 = arith.constant 0 : i32
    %16 = arith.cmpi eq, %arg1, %c0_i32_10 : i32
    %17 = arith.extui %16 : i1 to i32
    %c0_i32_11 = arith.constant 0 : i32
    %18 = arith.cmpi ne, %17, %c0_i32_11 : i32
    scf.if %18 {
      %c0_12 = arith.constant 0 : index
      %c0_13 = arith.constant 0 : index
      %19 = vector.load %arg5[%c0_12, %c0_13] : memref<1x1024xf32, #tpu.memory_space<vmem>>, vector<1x1024xf32>
      %20 = vector.shape_cast %19 : vector<1x1024xf32> to vector<1x1x1024xf32>
      %cst_14 = arith.constant dense<0.000000e+00> : vector<1xf32>
      %21 = vector.multi_reduction <add>, %20, %cst_14 [1, 2] : vector<1x1x1024xf32> to vector<1xf32>
      %22 = vector.shape_cast %21 : vector<1xf32> to vector<1x1x1xf32>
      %23 = vector.extract %22[0, 0, 0] : f32 from vector<1x1x1xf32>
      %24 = vector.broadcast %23 : f32 to vector<1x1xf32>
      %cst_15 = arith.constant 9.765625E-4 : f32
      %25 = vector.broadcast %cst_15 : f32 to vector<1x1xf32>
      %26 = arith.mulf %24, %25 : vector<1x1xf32>
      %27 = math.log %26 : vector<1x1xf32>
      %cst_16 = arith.constant 4.34294462 : f32
      %28 = vector.broadcast %cst_16 : f32 to vector<1x1xf32>
      %29 = arith.mulf %28, %27 : vector<1x1xf32>
      %cst_17 = arith.constant 48.1308022 : f32
      %30 = vector.broadcast %cst_17 : f32 to vector<1x1xf32>
      %31 = arith.subf %30, %29 : vector<1x1xf32>
      %32 = vector.shape_cast %31 : vector<1x1xf32> to vector<1x1x1xf32>
      %c0_18 = arith.constant 0 : index
      %c0_19 = arith.constant 0 : index
      %c0_20 = arith.constant 0 : index
      %33 = vector.load %arg4[%c0_18, %c0_19, %c0_20] : memref<1x1x1xf32, #tpu.memory_space<vmem>>, vector<1x1x1xf32>
      tpu.vector_store %arg4[%c0_18, %c0_19, %c0_20], %32 {strides = array<i32>} : memref<1x1x1xf32, #tpu.memory_space<vmem>>, vector<1x1x1xf32>,
    } else {
    }
    return
  }
  func.func @transform_0(%arg0: i32, %arg1: i32) -> (i32, i32, i32) {
    %c0_i32 = arith.constant 0 : i32
    %c0_i32_0 = arith.constant 0 : i32
    return %arg0, %arg1, %c0_i32 : i32, i32, i32
  }
  func.func @transform_1(%arg0: i32, %arg1: i32) -> (i32, i32, i32) {
    %c0_i32 = arith.constant 0 : i32
    %c0_i32_0 = arith.constant 0 : i32
    return %arg0, %arg1, %c0_i32 : i32, i32, i32
  }
  func.func @transform_2(%arg0: i32, %arg1: i32) -> (i32, i32, i32) {
    %c0_i32 = arith.constant 0 : i32
    %c0_i32_0 = arith.constant 0 : i32
    %c0_i32_1 = arith.constant 0 : i32
    return %arg0, %c0_i32, %c0_i32_0 : i32, i32, i32
  }
}

</mosaic_0001>

<llo_original>
// kernel: t_loss_psnr.1
$region0: #{t_loss_psnr.1}
  #allocation0 [shape = 'u32[]', space=smem, size = 0x4, offset = 0x4, fixed_abs, tag = 'smem constant byte address 0x4 - core index']
  #allocation1 [shape = 'u32[144,128]{1,0:T(1,128)}', space=vmem, size = 0x12000, scoped, tag = 'internal scratch']
  #allocation2 [shape = 'f32[1,1024]{1,0:T(1,128)}', space=vmem, size = 0x1000, scoped, tag = 'scratch operand']
  %s0 = inlined_call_operand.vmem [shape: f32[2,1,1024], index: 0, kind: input, shape index: {}]
  %s1 = inlined_call_operand.vmem [shape: f32[2,1,1024], index: 1, kind: input, shape index: {}]
  %s2 = inlined_call_operand.vmem [shape: f32[2,1,1], index: 2, kind: output, shape index: {}]
  %s3 = sld [smem:[#allocation0]]
  $region49: #{t_loss_psnr.1} parent=0
    _
  %s5 = ssub.s32 1, %s3
  %s6 = scalar_select 0, %s5, %s3
  loop: start=0, step=1, limit=4
  $region2: #{t_loss_psnr.1} parent=0 // loop_pre_header
    _
  $region3: #{t_loss_psnr.1} parent=0 // loop_header
    %s8 = sphi 0, %s12
    %p9 = scmp.ge.s32.totalorder %s8, 4
    %s15 = sphi 0, %s27
    %s16 = sphi 0, %s23
    %s17 = sphi 0, %s15
    %s18 = sphi 0, %s16
    %s19 = sphi 0, %s17
    %s20 = sphi 0, %s18
    %s32 = sphi 0, %s34
    %s35 = sphi 0, %s32
    %s36 = sphi 0, %s35
    %s52 = sphi 0, %s36
    %s60 = sphi 0, %s62
    %s63 = sphi 0, %s60
    %s64 = sphi 0, %s63
    %s80 = sphi 0, %s64
    %s86 = sphi 0, %s88
    %s89 = sphi 0, %s86
    %s90 = sphi 0, %s89
    %s106 = sphi 0, %s90
  $region4: #{t_loss_psnr.1} parent=0 // loop_header_branch
    %11 = sbr.rel (%p9) target = $region8
  $region5: #{t_loss_psnr.1} parent=0 // loop_body
    %s13 = ssub.s32 %s8, 1
    %s14 = ssub.s32 %s8, 2
    %s21 = sadd.s32 1, %s16
    %p22 = scmp.ge.s32.totalorder %s21, 1
    %s23 = scalar_select %p22, 0, %s21
    %s24 = sadd.s32 1, %s15
    %s25 = scalar_select %p22, %s24, %s15
    %p26 = scmp.ge.s32.totalorder %s25, 2
    %s27 = scalar_select %p26, 0, %s25
    %s28 = ssub.s32 %s15, %s27
    %s29 = ssub.s32 %s16, %s23
    %s30 = sor.u32 %s28, %s29
    %p31 = scmp.eq.s32.totalorder %s30, 0
    %s33 = sadd.s32 %s32, 1
    %s34 = scalar_select %p31, %s32, %s33
    %p37 = pneg %p31
    %p38 = scmp.eq.s32.totalorder %s8, 1
    %p39 = por %p37, %p38
    %p40 = scmp.ne.s32.totalorder %s32, %s35
    %p41 = scmp.eq.s32.totalorder %s8, 0
    %p42 = por %p40, %p41
    %p43 = scmp.ne.s32.totalorder %s32, %s35
    %p44 = scmp.eq.s32.totalorder %s13, 1
    %p45 = por %p43, %p44
    %p46 = scmp.ne.s32.totalorder %s35, %s36
    %p47 = scmp.eq.s32.totalorder %s13, 0
    %p48 = por %p46, %p47
    %p49 = scmp.ne.s32.totalorder %s35, %s36
    %p50 = scmp.eq.s32.totalorder %s14, 1
    %p51 = por %p49, %p50
    %p53 = scmp.ne.s32.totalorder %s36, %s52
    %p54 = scmp.eq.s32.totalorder %s14, 0
    %p55 = por %p53, %p54
    %s56 = ssub.s32 %s15, %s27
    %s57 = ssub.s32 %s16, %s23
    %s58 = sor.u32 %s56, %s57
    %p59 = scmp.eq.s32.totalorder %s58, 0
    %s61 = sadd.s32 %s60, 1
    %s62 = scalar_select %p59, %s60, %s61
    %p65 = pneg %p59
    %p66 = scmp.eq.s32.totalorder %s8, 1
    %p67 = por %p65, %p66
    %p68 = scmp.ne.s32.totalorder %s60, %s63
    %p69 = scmp.eq.s32.totalorder %s8, 0
    %p70 = por %p68, %p69
    %p71 = scmp.ne.s32.totalorder %s60, %s63
    %p72 = scmp.eq.s32.totalorder %s13, 1
    %p73 = por %p71, %p72
    %p74 = scmp.ne.s32.totalorder %s63, %s64
    %p75 = scmp.eq.s32.totalorder %s13, 0
    %p76 = por %p74, %p75
    %p77 = scmp.ne.s32.totalorder %s63, %s64
    %p78 = scmp.eq.s32.totalorder %s14, 1
    %p79 = por %p77, %p78
    %p81 = scmp.ne.s32.totalorder %s64, %s80
    %p82 = scmp.eq.s32.totalorder %s14, 0
    %p83 = por %p81, %p82
    %s84 = ssub.s32 %s15, %s27
    %p85 = scmp.eq.s32.totalorder %s84, 0
    %s87 = sadd.s32 %s86, 1
    %s88 = scalar_select %p85, %s86, %s87
    %p91 = pneg %p85
    %p92 = scmp.eq.s32.totalorder %s8, 1
    %p93 = por %p91, %p92
    %p94 = scmp.ne.s32.totalorder %s86, %s89
    %p95 = scmp.eq.s32.totalorder %s8, 0
    %p96 = por %p94, %p95
    %p97 = scmp.ne.s32.totalorder %s86, %s89
    %p98 = scmp.eq.s32.totalorder %s13, 1
    %p99 = por %p97, %p98
    %p100 = scmp.ne.s32.totalorder %s89, %s90
    %p101 = scmp.eq.s32.totalorder %s13, 0
    %p102 = por %p100, %p101
    %p103 = scmp.ne.s32.totalorder %s89, %s90
    %p104 = scmp.eq.s32.totalorder %s14, 1
    %p105 = por %p103, %p104
    %p107 = scmp.ne.s32.totalorder %s90, %s106
    %p108 = scmp.eq.s32.totalorder %s14, 0
    %p109 = por %p107, %p108
    %p110 = scmp.le.s32.totalorder 1, %s8
    %p111 = scmp.lt.s32.totalorder %s8, 3
    %p112 = pnand %p110, %p111
    %p113 = pneg %p112
    // Predicated region
    $region9: #{t_loss_psnr.1} parent=5 // pred_check
      _
    $region10: #{t_loss_psnr.1} parent=5 // pred_check_branch
      %115 = sbr.rel (%p112) target = $region12
    $region11: #{t_loss_psnr.1} parent=5 // pred_region
      %s116 = ssub.s32 %s8, 1
    $region12: #{t_loss_psnr.1} parent=5 // pred_fallthru
      _
    %p117 = scmp.lt.s32.totalorder %s8, 2
    // Predicated region
    $region13: #{t_loss_psnr.1} parent=5 // pred_check
      %p118 = pneg %p117
    $region14: #{t_loss_psnr.1} parent=5 // pred_check_branch
      %120 = sbr.rel (%p118) target = $region16
    $region15: #{t_loss_psnr.1} parent=5 // pred_region
      // Predicated region
      $region17: #{t_loss_psnr.1} parent=15 // pred_check
        %p121 = pneg %p42
      $region18: #{t_loss_psnr.1} parent=15 // pred_check_branch
        %123 = sbr.rel (%p121) target = $region20
      $region19: #{t_loss_psnr.1} parent=15 // pred_region
        %p124 = scmp.lt.s32.totalorder %s15, 1
        %s125 = scalar_select %p124, %s15, 1
        %p126 = scmp.lt.s32.totalorder %s16, 0
        %s127 = scalar_select %p126, %s16, 0
        %s128 = smul.addr %s127, 8
        %s129 = smul.addr %s125, 8
        %s130 = sadd.s32 %s128, %s129
        %s131 = scalar_lea.vmem %s0, %s130
      $region20: #{t_loss_psnr.1} parent=15 // pred_fallthru
        _
      // Predicated region
      $region21: #{t_loss_psnr.1} parent=15 // pred_check
        %p132 = pneg %p70
      $region22: #{t_loss_psnr.1} parent=15 // pred_check_branch
        %134 = sbr.rel (%p132) target = $region24
      $region23: #{t_loss_psnr.1} parent=15 // pred_region
        %p135 = scmp.lt.s32.totalorder %s15, 1
        %s136 = scalar_select %p135, %s15, 1
        %p137 = scmp.lt.s32.totalorder %s16, 0
        %s138 = scalar_select %p137, %s16, 0
        %s139 = smul.addr %s138, 8
        %s140 = smul.addr %s136, 8
        %s141 = sadd.s32 %s139, %s140
        %s142 = scalar_lea.vmem %s1, %s141
      $region24: #{t_loss_psnr.1} parent=15 // pred_fallthru
        _
    $region16: #{t_loss_psnr.1} parent=5 // pred_fallthru
      _
    %p143 = scmp.le.s32.totalorder 1, %s8
    %p144 = scmp.lt.s32.totalorder %s8, 3
    %p145 = pnand %p143, %p144
    %p146 = pneg %p145
    // Predicated region
    $region25: #{t_loss_psnr.1} parent=5 // pred_check
      _
    $region26: #{t_loss_psnr.1} parent=5 // pred_check_branch
      %148 = sbr.rel (%p145) target = $region28
    $region27: #{t_loss_psnr.1} parent=5 // pred_region
      %s149 = ssub.s32 %s8, 1
      %p150 = scmp.lt.s32.totalorder %s17, 1
      %s151 = scalar_select %p150, %s17, 1
      %p152 = scmp.lt.s32.totalorder %s18, 0
      %s153 = scalar_select %p152, %s18, 0
      %s154 = smul.addr %s153, 8
      %s155 = smul.addr %s151, 8
      %s156 = sadd.s32 %s154, %s155
      %s157 = scalar_lea.vmem %s0, %s156
      %p158 = pneg %p48
      %p159 = pneg %p45
      %p160 = scmp.lt.s32.totalorder %s17, 1
      %s161 = scalar_select %p160, %s17, 1
      %p162 = scmp.lt.s32.totalorder %s18, 0
      %s163 = scalar_select %p162, %s18, 0
      %s164 = smul.addr %s163, 8
      %s165 = smul.addr %s161, 8
      %s166 = sadd.s32 %s164, %s165
      %s167 = scalar_lea.vmem %s1, %s166
      %p168 = pneg %p76
      %p169 = pneg %p73
      %p170 = pneg %p102
      %p171 = pneg %p99
      %p172 = scmp.lt.s32.totalorder %s17, 1
      %s173 = scalar_select %p172, %s17, 1
      %s174 = scalar_lea.vmem %s2, %s173
      %p175 = scmp.lt.s32.totalorder %s17, 1
      %s176 = scalar_select %p175, %s17, 1
      %p177 = scmp.lt.s32.totalorder %s18, 0
      %s178 = scalar_select %p177, %s18, 0
      %s179 = smul.addr %s178, 8
      %s180 = smul.addr %s176, 8
      %s181 = sadd.s32 %s179, %s180
      %s182 = scalar_lea.vmem %s0, %s181
      %p183 = scmp.lt.s32.totalorder %s17, 1
      %s184 = scalar_select %p183, %s17, 1
      %p185 = scmp.lt.s32.totalorder %s18, 0
      %s186 = scalar_select %p185, %s18, 0
      %s187 = smul.addr %s186, 8
      %s188 = smul.addr %s184, 8
      %s189 = sadd.s32 %s187, %s188
      %s190 = scalar_lea.vmem %s1, %s189
      %p191 = scmp.lt.s32.totalorder %s17, 1
      %s192 = scalar_select %p191, %s17, 1
      %s193 = scalar_lea.vmem %s2, %s192
      %p194 = scmp.eq.s32.totalorder %s18, 0
      // Predicated region
      $region29: #{t_loss_psnr.1} parent=27 // pred_check
        %p195 = pneg %p194
      $region30: #{t_loss_psnr.1} parent=27 // pred_check_branch
        %197 = sbr.rel (%p195) target = $region32
      $region31: #{t_loss_psnr.1} parent=27 // pred_region
        %198 = vst [vmem:[#allocation2] sm:$0xff] 0.0
      $region32: #{t_loss_psnr.1} parent=27 // pred_fallthru
        _
      %v199 = vld [vmem:[%s182] sm:$0xff]
      %v200 = vfloor.f32 %v199
      %v201 = vld [vmem:[%s190] sm:$0xff]
      %v202 = vfloor.f32 %v201
      %v203 = vsub.f32 %v200, %v202
      %v204 = vld [vmem:[#allocation2] sm:$0xff]
      %v205 = vmul.f32 %v203, %v203
      %v206 = vadd.f32 %v205, 0.0
      %v207 = vadd.f32 %v204, %v206
      %208 = vst [vmem:[#allocation2] sm:$0xff] %v207
      // Predicated region
      $region33: #{t_loss_psnr.1} parent=27 // pred_check
        %p209 = pneg %p194
      $region34: #{t_loss_psnr.1} parent=27 // pred_check_branch
        %211 = sbr.rel (%p209) target = $region36
      $region35: #{t_loss_psnr.1} parent=27 // pred_region
        %v212 = vld [vmem:[#allocation2] sm:$0xff]
        %v214 = vlaneseq
        %v215 = vshrl.u32 %v214, 7
        %v216 = vsub.s32 0, %v215
        %v217 = vrot.slane %v212, %v216
        %v218 = vlaneseq
        %v219 = vshrl.u32 %v218, 7
        %v220 = vsub.s32 1, %v219
        %v221 = vrot.slane %v212, %v220
        %v222 = vlaneseq
        %v223 = vshrl.u32 %v222, 7
        %v224 = vsub.s32 2, %v223
        %v225 = vrot.slane %v212, %v224
        %v226 = vlaneseq
        %v227 = vshrl.u32 %v226, 7
        %v228 = vsub.s32 3, %v227
        %v229 = vrot.slane %v212, %v228
        %v230 = vlaneseq
        %v231 = vshrl.u32 %v230, 7
        %v232 = vsub.s32 4, %v231
        %v233 = vrot.slane %v212, %v232
        %v234 = vlaneseq
        %v235 = vshrl.u32 %v234, 7
        %v236 = vsub.s32 5, %v235
        %v237 = vrot.slane %v212, %v236
        %v238 = vlaneseq
        %v239 = vshrl.u32 %v238, 7
        %v240 = vsub.s32 6, %v239
        %v241 = vrot.slane %v212, %v240
        %v242 = vlaneseq
        %v243 = vshrl.u32 %v242, 7
        %v244 = vsub.s32 7, %v243
        %v245 = vrot.slane %v212, %v244
        %vm254 = vcmask 1040384
        %v255 = vsel %vm254, %v217, 0.0
        %v256 = vsel %vm254, %v221, 0.0
        %v257 = vadd.f32 %v255, %v256
        %v258 = vsel %vm254, %v225, 0.0
        %v259 = vadd.f32 %v257, %v258
        %v260 = vsel %vm254, %v229, 0.0
        %v261 = vadd.f32 %v259, %v260
        %v262 = vsel %vm254, %v233, 0.0
        %v263 = vadd.f32 %v261, %v262
        %v264 = vsel %vm254, %v237, 0.0
        %v265 = vadd.f32 %v263, %v264
        %v266 = vsel %vm254, %v241, 0.0
        %v267 = vadd.f32 %v265, %v266
        %v268 = vsel %vm254, %v245, 0.0
        %v269 = vadd.f32 %v267, %v268
        %270 = vadd.xlane.f32.xlu0 %v269
        %v271 = vpop.xlane.xlu0 %270
        %v272 = vrot.slane %v271, 4
        %v273 = vadd.f32 %v271, %v272
        %v274 = vrot.slane %v273, 2
        %v275 = vadd.f32 %v273, %v274
        %v276 = vrot.slane %v275, 1
        %v277 = vadd.f32 %v275, %v276
        %s278 = vtos %v277
        %v279 = vstv %s278
        %v280 = vmul.f32 %v279, 0.0009765625
        %v281 = vlog2.pop %v280
        %v282 = vmul.f32 %v281, 0.6931472
        %v283 = vmul.f32 %v282, 4.3429446
        %v284 = vsub.f32 48.130802, %v283
        %vm285 = vcmask 0
        %286 = vst.msk [vmem:[%s193] sm:$0x1] %vm285, %v284
      $region36: #{t_loss_psnr.1} parent=27 // pred_fallthru
        _
      %p287 = scmp.lt.s32.totalorder %s17, 1
      %s288 = scalar_select %p287, %s17, 1
      %s289 = scalar_lea.vmem %s2, %s288
      // Predicated region
      $region37: #{t_loss_psnr.1} parent=27 // pred_check
        %p290 = pneg %p99
      $region38: #{t_loss_psnr.1} parent=27 // pred_check_branch
        %292 = sbr.rel (%p290) target = $region40
      $region39: #{t_loss_psnr.1} parent=27 // pred_region
        _
      $region40: #{t_loss_psnr.1} parent=27 // pred_fallthru
        _
    $region28: #{t_loss_psnr.1} parent=5 // pred_fallthru
      _
    %p293 = scmp.le.s32.totalorder 2, %s8
    // Predicated region
    $region41: #{t_loss_psnr.1} parent=5 // pred_check
      %p294 = pneg %p293
    $region42: #{t_loss_psnr.1} parent=5 // pred_check_branch
      %296 = sbr.rel (%p294) target = $region44
    $region43: #{t_loss_psnr.1} parent=5 // pred_region
      %s297 = ssub.s32 %s8, 2
      // Predicated region
      $region45: #{t_loss_psnr.1} parent=43 // pred_check
        %p298 = pneg %p105
      $region46: #{t_loss_psnr.1} parent=43 // pred_check_branch
        %300 = sbr.rel (%p298) target = $region48
      $region47: #{t_loss_psnr.1} parent=43 // pred_region
        %p301 = scmp.lt.s32.totalorder %s19, 1
        %s302 = scalar_select %p301, %s19, 1
        %s303 = scalar_lea.vmem %s2, %s302
      $region48: #{t_loss_psnr.1} parent=43 // pred_fallthru
        _
    $region44: #{t_loss_psnr.1} parent=5 // pred_fallthru
      _
  $region6: #{t_loss_psnr.1} parent=0 // loop_footer
    %s12 = sadd.s32 1, %s8
  $region7: #{t_loss_psnr.1} parent=0 // loop_footer_branch
    %7 = sbr.rel target = $region3
  $region8: #{t_loss_psnr.1} parent=0 // loop_exit
    _

</llo_original>
